<compile_context>
chip_gen: v6e
topology: v6e:2x2x1
jax: 0.10.0
libtpu: 0.0.40
codegen_flags: <defaults>
</compile_context>

<pallas_src>
import functools

import jax
import jax.numpy as jnp
from jax.experimental import pallas as pl
from jax.experimental.pallas import tpu as pltpu

_LANE = 128
_SUBLANE = 8
# Tile-selection budget (well under v7x's 64 MiB physical VMEM) + explicit limit.
_VMEM_TILE_BUDGET = 32 * 1024 * 1024
_VMEM_LIMIT_BYTES = 48 * 1024 * 1024


def _round_up(x, m):
    return ((x + m - 1) // m) * m


def _linear_kernel(x_ref, w_ref, b_ref, o_ref):
    # x_ref: (tm, D_in)   w_ref: (D_in, D_out_pad)   b_ref: (1, D_out_pad)
    # o_ref: (tm, D_out_pad)  -- D_out_pad multiple of 128 => unmasked stores.
    acc = jnp.dot(x_ref[...], w_ref[...], preferred_element_type=jnp.float32)
    o_ref[...] = (acc + b_ref[...]).astype(o_ref.dtype)


@functools.partial(jax.jit, static_argnames=("d_out", "tm"))
def pallas_linear(x2d, w_pad, b_pad, *, d_out, tm=512):
    """y = x2d @ w_pad + b_pad, returning (M, d_out).

    x2d:   (M, D_in)
    w_pad: (D_in, D_out_pad)  pre-transposed, zero-padded to a multiple of 128
    b_pad: (1, D_out_pad)     zero-padded bias
    """
    M, d_in = x2d.shape
    d_out_pad = w_pad.shape[1]
    itemsize = jnp.dtype(x2d.dtype).itemsize

    # ---- Row-tile selection: as large as requested, multiple of 8, budgeted
    # against VMEM (double-buffered x/out tiles + resident weight/bias + f32 acc).
    m8 = _round_up(M, _SUBLANE)
    tm_eff = min(_round_up(tm, _SUBLANE), m8)

    def _vmem_bytes(t):
        tiles = 2 * t * (d_in + d_out_pad)       # double-buffered x + out tiles
        resident = d_in * d_out_pad + d_out_pad  # resident weight + bias
        acc = t * d_out_pad                      # f32 accumulator headroom
        return (tiles + resident + acc) * itemsize

    while tm_eff > _SUBLANE and _vmem_bytes(tm_eff) > _VMEM_TILE_BUDGET:
        tm_eff = _round_up(max(tm_eff // 2, _SUBLANE), _SUBLANE)

    # ---- cdiv grid + zero-pad rows (no divisibility requirement on M).
    num_tiles = pl.cdiv(M, tm_eff)
    m_padded = num_tiles * tm_eff
    if m_padded != M:
        x2d = jnp.pad(x2d, ((0, m_padded - M), (0, 0)))

    out = pl.pallas_call(
        _linear_kernel,
        out_shape=jax.ShapeDtypeStruct((m_padded, d_out_pad), x2d.dtype),
        grid_spec=pltpu.PrefetchScalarGridSpec(
            num_scalar_prefetch=0,
            grid=(num_tiles,),
            in_specs=[
                pl.BlockSpec((tm_eff, d_in), lambda i: (i, 0)),     # row tile of x
                pl.BlockSpec((d_in, d_out_pad), lambda i: (0, 0)),  # resident weight
                pl.BlockSpec((1, d_out_pad), lambda i: (0, 0)),     # resident bias
            ],
            out_specs=pl.BlockSpec((tm_eff, d_out_pad), lambda i: (i, 0)),
        ),
        compiler_params=pltpu.CompilerParams(
            dimension_semantics=("parallel",),   # shardable across v7x's 2 TCs
            vmem_limit_bytes=_VMEM_LIMIT_BYTES,
        ),
    )(x2d, w_pad, b_pad)

    # Slice off row padding and lane padding (padded cols are exact zeros/bias=0).
    return out[:M, :d_out]


class DensePoolerPallas:
    """JAX/Pallas port of DensePooler: nn.Linear applied to q or p (optionally tied)."""

    def __init__(self, input_dim=32, output_dim=32, tied=True, seed=0, name="pooler"):
        self.name = name
        self.input_dim = input_dim
        self.output_dim = output_dim
        self.tied = tied
        self.d_out_pad = max(_LANE, _round_up(output_dim, _LANE))

        key = jax.random.PRNGKey(seed)
        kq_w, kq_b, kp_w, kp_b = jax.random.split(key, 4)
        bound = 1.0 / (input_dim ** 0.5)
        # nn.Linear layout: weight (out, in), bias (out,).  Kept for reference/export.
        self.wq = jax.random.uniform(kq_w, (output_dim, input_dim), jnp.float32,
                                     -bound, bound)
        self.bq = jax.random.uniform(kq_b, (output_dim,), jnp.float32, -bound, bound)
        if tied:
            self.wp, self.bp = self.wq, self.bq
        else:
            self.wp = jax.random.uniform(kp_w, (output_dim, input_dim), jnp.float32,
                                         -bound, bound)
            self.bp = jax.random.uniform(kp_b, (output_dim,), jnp.float32,
                                         -bound, bound)

        # Pre-transpose + zero-pad ONCE (not per call): (D_in, D_out_pad), (1, D_out_pad).
        self.wq_packed = self._pack_weight(self.wq)
        self.bq_packed = self._pack_bias(self.bq)
        if tied:
            self.wp_packed, self.bp_packed = self.wq_packed, self.bq_packed
        else:
            self.wp_packed = self._pack_weight(self.wp)
            self.bp_packed = self._pack_bias(self.bp)

        # TODO(synk): load()/save_pooler() (torch checkpoint I/O) have no Pallas
        # equivalent; only the forward pass is implemented here.

    def _pack_weight(self, w):
        w_t = w.T  # (in, out)
        return jnp.pad(w_t, ((0, 0), (0, self.d_out_pad - self.output_dim)))

    def _pack_bias(self, b):
        return jnp.pad(b, (0, self.d_out_pad - self.output_dim)).reshape(1, self.d_out_pad)

    def _apply(self, x, w_pad, b_pad):
        lead = x.shape[:-1]
        x2d = x.reshape(-1, self.input_dim)
        y2d = pallas_linear(x2d, w_pad, b_pad, d_out=self.output_dim)
        return y2d.reshape(*lead, self.output_dim)

    def __call__(self, q=None, p=None):
        if q is not None:
            return self._apply(q, self.wq_packed, self.bq_packed)
        elif p is not None:
            return self._apply(p, self.wp_packed, self.bp_packed)
        else:
            raise ValueError


if __name__ == "__main__":
    batch, seq, hidden = 2, 8, 32
    key = jax.random.PRNGKey(0)
    kq, kp, kr, kb = jax.random.split(key, 4)
    q = jax.random.normal(kq, (batch, seq, hidden), jnp.float32)
    p = jax.random.normal(kp, (batch, seq, hidden), jnp.float32)

    pooler = DensePoolerPallas(input_dim=hidden, output_dim=hidden, tied=True, seed=0)

    yq = pooler(q=q)
    yp = pooler(p=p)
    jax.block_until_ready((yq, yp))

    # Reference check against plain JAX (same semantics as nn.Linear).
    ref_q = q @ pooler.wq.T + pooler.bq
    ref_p = p @ pooler.wp.T + pooler.bp
    assert yq.shape == (batch, seq, hidden)
    assert jnp.allclose(yq, ref_q, atol=1e-5, rtol=1e-5)
    assert jnp.allclose(yp, ref_p, atol=1e-5, rtol=1e-5)

    # Ragged row count (batch*seq not a multiple of 8) exercises cdiv + row pad.
    q_odd = jax.random.normal(kr, (3, 5, hidden), jnp.float32)
    y_odd = pooler(q=q_odd)
    jax.block_until_ready(y_odd)
    assert jnp.allclose(y_odd, q_odd @ pooler.wq.T + pooler.bq, atol=1e-5, rtol=1e-5)

    # Larger row count exercises the multi-tile grid (parallel dimension) + pad.
    q_big = jax.random.normal(kb, (4, 300, hidden), jnp.float32)
    y_big = pooler(q=q_big)
    jax.block_until_ready(y_big)
    assert jnp.allclose(y_big, q_big @ pooler.wq.T + pooler.bq, atol=1e-5, rtol=1e-5)

    print("KERNEL_OK")
</pallas_src>

<mosaic_0001>
module attributes {stable_mosaic.version = 11 : i64} {
  func.func @_linear_kernel(%arg0: i32, %arg1: memref<16x32xf32, #tpu.memory_space<vmem>>, %arg2: memref<32x128xf32, #tpu.memory_space<vmem>>, %arg3: memref<1x128xf32, #tpu.memory_space<vmem>>, %arg4: memref<16x128xf32, #tpu.memory_space<vmem>>) attributes {dimension_semantics = [#tpu.dimension_semantics<parallel>], iteration_bounds = array<i64: 1>, scalar_prefetch = 0 : i64, scratch_operands = 0 : i64, tpu.core_type = #tpu.core_type<tc>, window_params = [{transform_indices = @transform_0, window_bounds = array<i64: 16, 32>}, {pipeline_mode = #tpu.pipeline_mode<synchronous>, transform_indices = @transform_1, window_bounds = array<i64: 32, 128>}, {pipeline_mode = #tpu.pipeline_mode<synchronous>, transform_indices = @transform_2, window_bounds = array<i64: 1, 128>}, {transform_indices = @transform_3, window_bounds = array<i64: 16, 128>}]} {
    %c0 = arith.constant 0 : index
    %c0_0 = arith.constant 0 : index
    %0 = vector.load %arg1[%c0, %c0_0] : memref<16x32xf32, #tpu.memory_space<vmem>>, vector<16x32xf32>
    %c0_1 = arith.constant 0 : index
    %c0_2 = arith.constant 0 : index
    %1 = vector.load %arg2[%c0_1, %c0_2] : memref<32x128xf32, #tpu.memory_space<vmem>>, vector<32x128xf32>
    %cst = arith.constant dense<0.000000e+00> : vector<16x128xf32>
    %2 = tpu.matmul %0, %1, %cst {dimension_numbers = #tpu.dot_dimension_numbers<[1], [0], [0], [1], [0, 0, 1, 1], [], []>} : vector<16x32xf32>, vector<32x128xf32>, vector<16x128xf32> -> vector<16x128xf32>
    %c0_3 = arith.constant 0 : index
    %c0_4 = arith.constant 0 : index
    %3 = vector.load %arg3[%c0_3, %c0_4] : memref<1x128xf32, #tpu.memory_space<vmem>>, vector<1x128xf32>
    %4 = vector.broadcast %3 : vector<1x128xf32> to vector<16x128xf32>
    %5 = arith.addf %2, %4 : vector<16x128xf32>
    %c0_5 = arith.constant 0 : index
    %c0_6 = arith.constant 0 : index
    %6 = vector.load %arg4[%c0_5, %c0_6] : memref<16x128xf32, #tpu.memory_space<vmem>>, vector<16x128xf32>
    tpu.vector_store %arg4[%c0_5, %c0_6], %5 {strides = array<i32>} : memref<16x128xf32, #tpu.memory_space<vmem>>, vector<16x128xf32>,
    return
  }
  func.func @transform_0(%arg0: i32) -> (i32, i32) {
    %c0_i32 = arith.constant 0 : i32
    %c0_i32_0 = arith.constant 0 : i32
    return %arg0, %c0_i32 : i32, i32
  }
  func.func @transform_1(%arg0: i32) -> (i32, i32) {
    %c0_i32 = arith.constant 0 : i32
    %c0_i32_0 = arith.constant 0 : i32
    %c0_i32_1 = arith.constant 0 : i32
    return %c0_i32, %c0_i32_0 : i32, i32
  }
  func.func @transform_2(%arg0: i32) -> (i32, i32) {
    %c0_i32 = arith.constant 0 : i32
    %c0_i32_0 = arith.constant 0 : i32
    %c0_i32_1 = arith.constant 0 : i32
    return %c0_i32, %c0_i32_0 : i32, i32
  }
  func.func @transform_3(%arg0: i32) -> (i32, i32) {
    %c0_i32 = arith.constant 0 : i32
    %c0_i32_0 = arith.constant 0 : i32
    return %arg0, %c0_i32 : i32, i32
  }
}

</mosaic_0001>

<llo_original>
// kernel: pallas_linear.1
$region0: #{pallas_linear.1}
  #allocation0 [shape = 'u32[]', space=smem, size = 0x4, offset = 0x4, fixed_abs, tag = 'smem constant byte address 0x4 - core index']
  #allocation1 [shape = 'u32[144,128]{1,0:T(1,128)}', space=vmem, size = 0x12000, scoped, tag = 'internal scratch']
  %s0 = inlined_call_operand.hbm [shape: f32[16,32], index: 0, kind: input, shape index: {}]
  %s1 = inlined_call_operand.hbm [shape: f32[32,128], index: 1, kind: input, shape index: {}]
  %s2 = inlined_call_operand.vmem [shape: f32[1,128], index: 2, kind: input, shape index: {}]
  %s3 = inlined_call_operand.hbm [shape: f32[16,128], index: 3, kind: output, shape index: {}]
  %s4 = sld [smem:[#allocation0]]
  $region30: #{pallas_linear.1} parent=0
    _
  %s6 = ssub.s32 1, %s4
  %s7 = scalar_select 0, %s6, %s4
  $region1: #{pallas_linear.1} parent=0
    #allocation2 [shape = 'u8[8192]{0}', space=vmem, size = 0x2000, scoped, tag = 'input window, operand 0, single buffered']
    #allocation3 [shape = 's32[1]{0}', space=sflag, size = 0x4, scoped, tag = 'scoped memory for pallas_linear.1']
    #allocation4 [shape = 's32[1]{0}', space=sflag, size = 0x4, scoped, tag = 'scoped memory for pallas_linear.1']
    #allocation5 [shape = 'u8[16384]{0}', space=vmem, size = 0x4000, scoped, tag = 'input window, operand 1, single buffered']
    #allocation6 [shape = 's32[1]{0}', space=sflag, size = 0x4, scoped, tag = 'scoped memory for pallas_linear.1']
    #allocation7 [shape = 'u8[8192]{0}', space=vmem, size = 0x2000, scoped, tag = 'output window, operand 0, single buffered']
    %8 = vsyncpa [#allocation3], 0
    %9 = vsyncpa [#allocation6], 0
    %10 = vsyncpa [#allocation4], 0
    // Predicated region
    $region2: #{pallas_linear.1} parent=1 // pred_check
      _
    $region3: #{pallas_linear.1} parent=1 // pred_check_branch
      %12 = sbr.rel (0) target = $region5
    $region4: #{pallas_linear.1} parent=1 // pred_region
      %s14 = ssub.s32 256, 256
      %15 = vsyncadd [#allocation3], %s14
      %s16 = sshll.u32 [#allocation2], 4
      %s17 = int_to_ptr.vmem [resolvable:$true] %s16
      %22 = dma.hbm_to_vmem [thread:$0]  %s0, 256, %s17, [#allocation3], 128, 128, 8
    $region5: #{pallas_linear.1} parent=1 // pred_fallthru
      _
    // Predicated region
    $region6: #{pallas_linear.1} parent=1 // pred_check
      _
    $region7: #{pallas_linear.1} parent=1 // pred_check_branch
      %24 = sbr.rel (0) target = $region9
    $region8: #{pallas_linear.1} parent=1 // pred_region
      %s26 = ssub.s32 512, 512
      %27 = vsyncadd [#allocation6], %s26
      %s28 = sshll.u32 [#allocation5], 4
      %s29 = int_to_ptr.vmem [resolvable:$true] %s28
      %34 = dma.hbm_to_vmem [thread:$0]  %s1, 512, %s29, [#allocation6], 128, 128, 8
    $region9: #{pallas_linear.1} parent=1 // pred_fallthru
      _
    // Predicated region
    $region10: #{pallas_linear.1} parent=1 // pred_check
      _
    $region11: #{pallas_linear.1} parent=1 // pred_check_branch
      %36 = sbr.rel (0) target = $region13
    $region12: #{pallas_linear.1} parent=1 // pred_region
      _
    $region13: #{pallas_linear.1} parent=1 // pred_fallthru
      _
    // Predicated region
    $region14: #{pallas_linear.1} parent=1 // pred_check
      _
    $region15: #{pallas_linear.1} parent=1 // pred_check_branch
      %38 = sbr.rel (0) target = $region17
    $region16: #{pallas_linear.1} parent=1 // pred_region
      %39 = dma.done [#allocation3], 256
    $region17: #{pallas_linear.1} parent=1 // pred_fallthru
      _
    // Predicated region
    $region18: #{pallas_linear.1} parent=1 // pred_check
      _
    $region19: #{pallas_linear.1} parent=1 // pred_check_branch
      %41 = sbr.rel (0) target = $region21
    $region20: #{pallas_linear.1} parent=1 // pred_region
      %42 = dma.done [#allocation6], 512
    $region21: #{pallas_linear.1} parent=1 // pred_fallthru
      _
    %v43 = vld [vmem:[#allocation2] sm:$0xff]
    %v44 = vld [vmem:[#allocation2 + $0x8] sm:$0xff]
    %v45 = vld [vmem:[#allocation5] sm:$0xff]
    %v46 = vld [vmem:[#allocation5 + $0x8] sm:$0xff]
    %v47 = vld [vmem:[#allocation5 + $0x10] sm:$0xff]
    %v48 = vld [vmem:[#allocation5 + $0x18] sm:$0xff]
    %v49 = vld [vmem:[%s2] sm:$0x1]
    %v51 = vlaneseq
    %v52 = vshrl.u32 %v51, 7
    %v53 = vsub.s32 0, %v52
    %v54 = vrot.slane %v49, %v53
    %vm56 = vcmask 261120
    %v58 = vsel %vm56, %v43, 0
    %v61 = vsel %vm56, %v44, 0
    %63 = vmatprep.subr.mxu0 0.0
    %64 = vmatpush1.msra.mxu0 0.0
    %65 = vmatprep.subr.mxu0 0.0
    %66 = vmatpush1.msra.mxu0 0.0
    %67 = vmatprep.subr.mxu0 0.0
    %68 = vmatpush1.msra.mxu0 0.0
    %69 = vmatprep.subr.mxu0 0.0
    %70 = vmatpush1.msra.mxu0 0.0
    %71 = vmatprep.subr.mxu0 0.0
    %72 = vmatpush1.msra.mxu0 0.0
    %73 = vmatprep.subr.mxu0 0.0
    %74 = vmatpush1.msra.mxu0 0.0
    %75 = vmatprep.subr.mxu0 0.0
    %76 = vmatpush1.msra.mxu0 0.0
    %77 = vmatprep.subr.mxu0 0.0
    %78 = vmatpush1.msra.mxu0 0.0
    %79 = vmatprep.subr.mxu0 0.0
    %80 = vmatpush1.msra.mxu0 0.0
    %81 = vmatprep.subr.mxu0 0.0
    %82 = vmatpush1.msra.mxu0 0.0
    %83 = vmatprep.subr.mxu0 0.0
    %84 = vmatpush1.msra.mxu0 0.0
    %85 = vmatprep.subr.mxu0 0.0
    %86 = vmatpush1.msra.mxu0 0.0
    %87 = vmatprep.subr.mxu0 0.0
    %88 = vmatpush1.msra.mxu0 %v48
    %89 = vmatprep.subr.mxu0 0.0
    %90 = vmatpush1.msra.mxu0 %v47
    %91 = vmatprep.subr.mxu0 0.0
    %92 = vmatpush1.msra.mxu0 %v46
    %93 = vmatprep.subr.mxu0 0.0
    %94 = vmatpush1.msra.mxu0 %v45
    %95 = vmatprep.subr.mxu0 0.0
    %96 = vmatpush2.msra.mxu0 0.0
    %97 = vmatprep.subr.mxu0 0.0
    %98 = vmatpush2.msra.mxu0 0.0
    %99 = vmatprep.subr.mxu0 0.0
    %100 = vmatpush2.msra.mxu0 0.0
    %101 = vmatprep.subr.mxu0 0.0
    %102 = vmatpush2.msra.mxu0 0.0
    %103 = vmatprep.subr.mxu0 0.0
    %104 = vmatpush2.msra.mxu0 0.0
    %105 = vmatprep.subr.mxu0 0.0
    %106 = vmatpush2.msra.mxu0 0.0
    %107 = vmatprep.subr.mxu0 0.0
    %108 = vmatpush2.msra.mxu0 0.0
    %109 = vmatprep.subr.mxu0 0.0
    %110 = vmatpush2.msra.mxu0 0.0
    %111 = vmatprep.subr.mxu0 0.0
    %112 = vmatpush2.msra.mxu0 0.0
    %113 = vmatprep.subr.mxu0 0.0
    %114 = vmatpush2.msra.mxu0 0.0
    %115 = vmatprep.subr.mxu0 0.0
    %116 = vmatpush2.msra.mxu0 0.0
    %117 = vmatprep.subr.mxu0 0.0
    %118 = vmatpush2.msra.mxu0 0.0
    %119 = vmatprep.subr.mxu0 0.0
    %120 = vmatpush2.msra.mxu0 0.0
    %121 = vmatprep.subr.mxu0 0.0
    %122 = vmatpush2.msra.mxu0 0.0
    %123 = vmatprep.subr.mxu0 0.0
    %124 = vmatpush2.msra.mxu0 0.0
    %125 = vmatprep.subr.mxu0 0.0
    %126 = vmatpush2.msra.mxu0 0.0
    %127 = vmatprep.mubr.f32.mxu0 0.0
    %128 = vmatmul.mubr.f32.gmra.mxu0 %v58
    %v129 = vpop.f32.mrf.mxu0
    %v130 = vadd.f32 %v54, %v129
    %v131 = vpop.f32.mrf.mxu0
    %132 = vmatprep.mubr.f32.mxu0 0.0
    %133 = vmatmul.mubr.f32.gmra.mxu0 %v61
    %v134 = vpop.f32.mrf.mxu0
    %v135 = vadd.f32 %v54, %v134
    %v136 = vpop.f32.mrf.mxu0
    %137 = vdwg.mxu0
    %138 = vst [vmem:[#allocation7] sm:$0xff] %v130
    %139 = vst [vmem:[#allocation7 + $0x8] sm:$0xff] %v135
    // Predicated region
    $region22: #{pallas_linear.1} parent=1 // pred_check
      _
    $region23: #{pallas_linear.1} parent=1 // pred_check_branch
      %141 = sbr.rel (0) target = $region25
    $region24: #{pallas_linear.1} parent=1 // pred_region
      %s143 = ssub.s32 256, 256
      %144 = vsyncadd [#allocation4], %s143
      %s145 = sshll.u32 [#allocation7], 4
      %s146 = int_to_ptr.vmem [resolvable:$true] %s145
      %151 = dma.vmem_to_hbm [thread:$0]  %s146, 256, %s3, [#allocation4], 128, 128, 8
    $region25: #{pallas_linear.1} parent=1 // pred_fallthru
      _
    // Predicated region
    $region26: #{pallas_linear.1} parent=1 // pred_check
      _
    $region27: #{pallas_linear.1} parent=1 // pred_check_branch
      %153 = sbr.rel (0) target = $region29
    $region28: #{pallas_linear.1} parent=1 // pred_region
      %154 = dma.done [#allocation4], 256
    $region29: #{pallas_linear.1} parent=1 // pred_fallthru
      _
    %155 = vsyncpa [#allocation3], 1
    %156 = vsyncpa [#allocation6], 1
    %157 = vsyncpa [#allocation4], 1

</llo_original>
